<compile_context>
chip_gen: v7x
topology: tpu7x:2x2x1
jax: 0.10.0
libtpu: 0.0.40
codegen_flags: <defaults>
</compile_context>

<pallas_src>
import functools

import jax
import jax.numpy as jnp
from jax.experimental import pallas as pl
from jax.experimental.pallas import tpu as pltpu


# Below this many output bytes, XLA's fused pad beats the pallas_call fixed cost.
_SMALL_IMAGE_BYTES = 2 * 1024 * 1024

# Soft target for one (input block + output block) pair: ~1-2 MiB tiles already reach
# ~85% of HBM roofline and keep the grid deep enough to pipeline / megacore-shard.
_TARGET_BLOCK_BYTES = 2 * 1024 * 1024

# Hard per-pair cap; double-buffering gives ~2x this in VMEM -> ~12 MiB, comfortably
# under the 32 MiB scoped VMEM requested below on v5e / v6e / v7x.
_HARD_BLOCK_BYTES = 6 * 1024 * 1024

# If even the minimum legal block exceeds this, fall back to jnp.pad (pathological
# aspect ratios only) rather than risk a VMEM OOM.
_FALLBACK_BLOCK_BYTES = 12 * 1024 * 1024

# Minimum total grid steps whenever the Pallas path runs: keeps the DMA pipeline full
# and gives v7x megacore sharding >= 2 blocks per TensorCore.
_MIN_GRID_STEPS = 4


def _cdiv(a, b):
    return -(-a // b)


def _round_down(x, m):
    return (x // m) * m


def _get_padding_sequence(height: int, width: int):
    """Static (trace-time) replica of Pad._get_padding_sequence."""
    flag = height - width
    if flag == 0:
        return (0, 0, 0, 0)
    diff = abs(flag)
    border_1, border_2 = diff // 2, round(diff / 2)  # Python round(), as in reference
    if flag > 0:
        top, bottom = 0, 0
        left, right = border_1, border_2
    else:
        top, bottom = border_1, border_2
        left, right = 0, 0
    return (left, top, right, bottom)


# --------------------------------------------------------------------------- kernels
def _pad_lr_kernel(x_ref, o_ref, *, fill, left, W):
    """Left/right padding. Two small border-band fills + one lane-offset interior
    store; each output element written exactly once (no concat temp)."""
    c_blk, th, W_out = o_ref.shape
    if left > 0:
        o_ref[:, :, :left] = jnp.full((c_blk, th, left), fill, dtype=o_ref.dtype)
    right = W_out - (left + W)
    if right > 0:
        o_ref[:, :, left + W:] = jnp.full((c_blk, th, right), fill, dtype=o_ref.dtype)
    o_ref[:, :, left:left + W] = x_ref[...]


def _pad_tb_kernel(x_ref, o_ref, *, fill, top, H):
    """Top/bottom padding: fill only the border row bands, copy the interior once.
    All stores are lane-dense, full block width; interior is only sublane-offset."""
    c_blk, H_out, tw = o_ref.shape
    if top > 0:
        o_ref[:, :top, :] = jnp.full((c_blk, top, tw), fill, dtype=o_ref.dtype)
    bottom = H_out - (top + H)
    if bottom > 0:
        o_ref[:, top + H:, :] = jnp.full((c_blk, bottom, tw), fill, dtype=o_ref.dtype)
    o_ref[:, top:top + H, :] = x_ref[...]


# ------------------------------------------------------------------- tile selection
def _tiles_case_lr(C, H, W, W_out, itemsize):
    """Tile (C, H) for the left/right-pad kernel; lane dim (W / W_out) stays full."""
    align = {1: 32, 2: 16}.get(itemsize, 8)      # packed sublane tiling per dtype
    per_row = (W + W_out) * itemsize             # in + out bytes, one row, one channel

    if H * per_row <= _TARGET_BLOCK_BYTES:
        th = H
    else:
        th = min(H, max(align, _round_down(_TARGET_BLOCK_BYTES // per_row, align)))
    c_blk = max(1, min(C, _TARGET_BLOCK_BYTES // max(th * per_row, 1)))

    def pair_bytes():
        return c_blk * th * per_row

    # Hard VMEM cap.
    while c_blk > 1 and pair_bytes() > _HARD_BLOCK_BYTES:
        c_blk //= 2
    while th >= 2 * align and pair_bytes() > _HARD_BLOCK_BYTES:
        th = max(align, _round_down(th // 2, align))

    # Minimum grid depth (pipelining + v7x megacore): shrink channels first, then H.
    def steps():
        return _cdiv(C, c_blk) * _cdiv(H, th)

    while steps() < _MIN_GRID_STEPS and c_blk > 1:
        c_blk //= 2
    while steps() < _MIN_GRID_STEPS and th >= 2 * align:
        th = max(align, _round_down(th // 2, align))
    return c_blk, th, pair_bytes()


def _tiles_case_tb(C, H, H_out, W, itemsize):
    """Tile (C, W) for the top/bottom-pad kernel; sublane dim (H / H_out) stays full.
    Lane-width first (review): tw >= 512 lanes (or full W) keeps the strided per-row
    DMA bursts long; leftover budget goes to batching channels."""
    lane = 128
    per_col = (H + H_out) * itemsize             # in + out bytes, one lane, one channel

    if W * per_col <= _TARGET_BLOCK_BYTES:
        tw = W
    else:
        tw_budget = _round_down(_TARGET_BLOCK_BYTES // per_col, lane)
        tw = min(W, max(tw_budget, 512, lane))
    # Hard VMEM cap overrides the 512-lane preference for extreme aspect ratios.
    while tw >= 2 * lane and tw * per_col > _HARD_BLOCK_BYTES:
        tw = max(lane, _round_down(tw // 2, lane))

    c_blk = max(1, min(C, _TARGET_BLOCK_BYTES // max(tw * per_col, 1)))

    def pair_bytes():
        return c_blk * tw * per_col

    while c_blk > 1 and pair_bytes() > _HARD_BLOCK_BYTES:
        c_blk //= 2

    # Minimum grid depth: shrink channels first, then lane width (but never below
    # 512 lanes / full W -- burst length beats extra grid depth on this path).
    def steps():
        return _cdiv(C, c_blk) * _cdiv(W, tw)

    tw_floor = min(W, 512)
    while steps() < _MIN_GRID_STEPS and c_blk > 1:
        c_blk //= 2
    while steps() < _MIN_GRID_STEPS and tw > tw_floor and tw >= 2 * lane:
        tw = max(tw_floor, lane, _round_down(tw // 2, lane))
    return c_blk, tw, pair_bytes()


# ------------------------------------------------------------------------- wrapper
def pad_to_square(image, fill: int = 0, padding_mode: str = "constant",
                  *, _small_image_bytes: int = _SMALL_IMAGE_BYTES):
    """Pallas equivalent of Pad(fill, padding_mode).forward(image)."""
    if image.ndim not in (2, 3):
        raise ValueError("Image should be 2/3 dimensional")
    if image.ndim == 2:
        image = image[None]                      # (H, W) -> (1, H, W); stays 3-D

    if padding_mode != "constant":
        # TODO(synk): only 'constant' padding_mode is lowered (reflect/edge/symmetric
        # are not implemented).
        raise NotImplementedError("Only padding_mode='constant' is supported")

    C, H, W = image.shape
    left, top, right, bottom = _get_padding_sequence(H, W)

    # Fast path: no padding at all (square, or |H-W| == 1 where banker's rounding in
    # the reference yields zero borders).
    if (left, top, right, bottom) == (0, 0, 0, 0):
        return image

    H_out = H + top + bottom
    W_out = W + left + right
    itemsize = jnp.dtype(image.dtype).itemsize

    def _xla_pad():
        return jnp.pad(image, ((0, 0), (top, bottom), (left, right)),
                       constant_values=fill)

    # Fast path: below the crossover, XLA's fused pad (already at HBM roofline) beats
    # the pallas_call fixed launch overhead.
    if C * H_out * W_out * itemsize < _small_image_bytes:
        return _xla_pad()

    compiler_params = pltpu.CompilerParams(
        dimension_semantics=("parallel", "parallel"),
        vmem_limit_bytes=32 * 1024 * 1024,
    )

    if left or right:
        # ---- Case A: pad left/right (H_out == H). Tile C and H; lane dim full. ----
        c_blk, th, pair = _tiles_case_lr(C, H, W, W_out, itemsize)
        if pair > _FALLBACK_BLOCK_BYTES:
            return _xla_pad()                    # pathological aspect ratio
        grid = (_cdiv(C, c_blk), _cdiv(H, th))
        kernel = functools.partial(_pad_lr_kernel, fill=fill, left=left, W=W)
        return pl.pallas_call(
            kernel,
            out_shape=jax.ShapeDtypeStruct((C, H_out, W_out), image.dtype),
            grid=grid,
            in_specs=[pl.BlockSpec((c_blk, th, W), lambda c, h: (c, h, 0))],
            out_specs=pl.BlockSpec((c_blk, th, W_out), lambda c, h: (c, h, 0)),
            compiler_params=compiler_params,
        )(image)

    # ---- Case B: pad top/bottom (W_out == W). Tile C and W; sublane dim full. ----
    # TODO(synk): the interior rows are contiguous in both input and output, so the
    # bulk copy could be a direct HBM->HBM make_async_copy (memory_space=pl.ANY) that
    # skips the VMEM bounce entirely; kept as a simple streaming kernel here.
    c_blk, tw, pair = _tiles_case_tb(C, H, H_out, W, itemsize)
    if pair > _FALLBACK_BLOCK_BYTES:
        return _xla_pad()
    grid = (_cdiv(C, c_blk), _cdiv(W, tw))
    kernel = functools.partial(_pad_tb_kernel, fill=fill, top=top, H=H)
    return pl.pallas_call(
        kernel,
        out_shape=jax.ShapeDtypeStruct((C, H_out, W_out), image.dtype),
        grid=grid,
        in_specs=[pl.BlockSpec((c_blk, H, tw), lambda c, w: (c, 0, w))],
        out_specs=pl.BlockSpec((c_blk, H_out, tw), lambda c, w: (c, 0, w)),
        compiler_params=compiler_params,
    )(image)


if __name__ == "__main__":
    key = jax.random.PRNGKey(0)
    k1, k2, k3, k4, k5 = jax.random.split(key, 5)

    def ref_pad(img, fill=0):
        if img.ndim == 2:
            img = img[None]
        _, h, w = img.shape
        l, t, r, b = _get_padding_sequence(h, w)
        return jnp.pad(img, ((0, 0), (t, b), (l, r)), constant_values=fill)

    # Case A: tall image -> pad left/right, forced through the Pallas kernel path.
    x_tall = jax.random.normal(k1, (3, 96, 64), dtype=jnp.float32)
    y_tall = jax.block_until_ready(pad_to_square(x_tall, _small_image_bytes=0))
    assert y_tall.shape == (3, 96, 96), y_tall.shape
    assert jnp.array_equal(y_tall, ref_pad(x_tall)), "left/right pad mismatch"

    # Case B: wide image -> pad top/bottom, forced through the Pallas kernel path.
    x_wide = jax.random.normal(k2, (4, 64, 96), dtype=jnp.float32)
    y_wide = jax.block_until_ready(pad_to_square(x_wide, fill=3, _small_image_bytes=0))
    assert y_wide.shape == (4, 96, 96), y_wide.shape
    assert jnp.array_equal(y_wide, ref_pad(x_wide, fill=3)), "top/bottom pad mismatch"

    # Odd padding difference (unaligned lane offset, non-square output), Pallas path.
    x_odd = jax.random.normal(k3, (2, 48, 27), dtype=jnp.float32)
    y_odd = jax.block_until_ready(pad_to_square(x_odd, _small_image_bytes=0))
    assert jnp.array_equal(y_odd, ref_pad(x_odd)), "odd-diff pad mismatch"

    # Square image -> identity fast path (no kernel, no copy).
    x_sq = jax.random.normal(k4, (2, 32, 32), dtype=jnp.float32)
    y_sq = jax.block_until_ready(pad_to_square(x_sq))
    assert jnp.array_equal(y_sq, x_sq), "square identity mismatch"

    # Tiny 2-D image -> jnp.pad fast path (also exercises unsqueeze + custom fill).
    x_2d = jax.random.normal(k5, (8, 16), dtype=jnp.float32)
    y_2d = jax.block_until_ready(pad_to_square(x_2d, fill=7))
    assert y_2d.ndim == 3, y_2d.shape
    assert jnp.array_equal(y_2d, ref_pad(x_2d, fill=7)), "2-D tiny-image pad mismatch"

    print("KERNEL_OK")
</pallas_src>

<mosaic_0001>
module attributes {stable_mosaic.version = 11 : i64} {
  func.func @_pad_lr_kernel(%arg0: i32, %arg1: i32, %arg2: memref<1x48x64xf32, #tpu.memory_space<vmem>>, %arg3: memref<1x48x96xf32, #tpu.memory_space<vmem>>) attributes {dimension_semantics = [#tpu.dimension_semantics<parallel>, #tpu.dimension_semantics<parallel>], iteration_bounds = array<i64: 3, 2>, scalar_prefetch = 0 : i64, scratch_operands = 0 : i64, tpu.core_type = #tpu.core_type<tc>, window_params = [{transform_indices = @transform_0, window_bounds = array<i64: 1, 48, 64>}, {transform_indices = @transform_1, window_bounds = array<i64: 1, 48, 96>}]} {
    %cst = arith.constant 0.000000e+00 : f32
    %0 = vector.broadcast %cst : f32 to vector<1x48x16xf32>
    %c0 = arith.constant 0 : index
    %c0_0 = arith.constant 0 : index
    %c0_1 = arith.constant 0 : index
    %1 = vector.load %arg3[%c0, %c0_0, %c0_1] : memref<1x48x96xf32, #tpu.memory_space<vmem>>, vector<1x48x16xf32>
    tpu.vector_store %arg3[%c0, %c0_0, %c0_1], %0 {strides = array<i32>} : memref<1x48x96xf32, #tpu.memory_space<vmem>>, vector<1x48x16xf32>,
    %cst_2 = arith.constant 0.000000e+00 : f32
    %2 = vector.broadcast %cst_2 : f32 to vector<1x48x16xf32>
    %c0_3 = arith.constant 0 : index
    %c0_4 = arith.constant 0 : index
    %c80 = arith.constant 80 : index
    %3 = vector.load %arg3[%c0_3, %c0_4, %c80] : memref<1x48x96xf32, #tpu.memory_space<vmem>>, vector<1x48x16xf32>
    tpu.vector_store %arg3[%c0_3, %c0_4, %c80], %2 {strides = array<i32>} : memref<1x48x96xf32, #tpu.memory_space<vmem>>, vector<1x48x16xf32>,
    %c0_5 = arith.constant 0 : index
    %c0_6 = arith.constant 0 : index
    %c0_7 = arith.constant 0 : index
    %4 = vector.load %arg2[%c0_5, %c0_6, %c0_7] : memref<1x48x64xf32, #tpu.memory_space<vmem>>, vector<1x48x64xf32>
    %c0_8 = arith.constant 0 : index
    %c0_9 = arith.constant 0 : index
    %c16 = arith.constant 16 : index
    %5 = vector.load %arg3[%c0_8, %c0_9, %c16] : memref<1x48x96xf32, #tpu.memory_space<vmem>>, vector<1x48x64xf32>
    tpu.vector_store %arg3[%c0_8, %c0_9, %c16], %4 {strides = array<i32>} : memref<1x48x96xf32, #tpu.memory_space<vmem>>, vector<1x48x64xf32>,
    return
  }
  func.func @transform_0(%arg0: i32, %arg1: i32) -> (i32, i32, i32) {
    %c0_i32 = arith.constant 0 : i32
    %c0_i32_0 = arith.constant 0 : i32
    return %arg0, %arg1, %c0_i32 : i32, i32, i32
  }
  func.func @transform_1(%arg0: i32, %arg1: i32) -> (i32, i32, i32) {
    %c0_i32 = arith.constant 0 : i32
    %c0_i32_0 = arith.constant 0 : i32
    return %arg0, %arg1, %c0_i32 : i32, i32, i32
  }
}

</mosaic_0001>

<llo_original>
// kernel: tpu_custom_call.1
$region0: #{tpu_custom_call.1}
  #allocation0 [shape = 'u32[]', space=smem, size = 0x4, offset = 0x4, fixed_abs, tag = 'smem constant byte address 0x4 - core index']
  #allocation1 [shape = 'u32[144,128]{1,0:T(1,128)}', space=vmem, size = 0x12000, scoped, tag = 'internal scratch']
  %s0 = inlined_call_operand.vmem [shape: f32[3,96,64], index: 0, kind: input, shape index: {}]
  %s1 = inlined_call_operand.hbm [shape: f32[3,96,96], index: 1, kind: output, shape index: {}]
  %s2 = sld [smem:[#allocation0]]
  $region37: #{tpu_custom_call.1} parent=0
    _
  %s4 = ssub.s32 1, %s2
  %s5 = scalar_select 0, %s4, %s2
  $region1: #{tpu_custom_call.1} parent=0
    #allocation2 [shape = 'u8[49152]{0}', space=vmem, size = 0xc000, scoped, tag = 'output window, operand 0']
    #allocation3 [shape = 's32[2]{0}', space=sflag, size = 0x8, scoped, tag = 'scoped memory for tpu_custom_call.1']
    %6 = vsyncpa [#allocation3], 0
    %s7 = scalar_lea.sflag [#allocation3], 1
    %8 = vsyncpa %s7, 0
    loop: start=0, step=1, limit=8
    $region2: #{tpu_custom_call.1} parent=1 // loop_pre_header
      _
    $region3: #{tpu_custom_call.1} parent=1 // loop_header
      %s10 = sphi 0, %s14
      %p11 = scmp.ge.s32.totalorder %s10, 8
      %s17 = sphi 0, %s29
      %s18 = sphi 0, %s25
      %s19 = sphi 0, %s17
      %s20 = sphi 0, %s18
      %s21 = sphi 0, %s19
      %s22 = sphi 0, %s20
      %s34 = sphi 0, %s36
      %s37 = sphi 0, %s34
      %s38 = sphi 0, %s37
      %s54 = sphi 0, %s38
      %s62 = sphi 0, %s64
      %s65 = sphi 0, %s62
      %s66 = sphi 0, %s65
      %s82 = sphi 0, %s66
    $region4: #{tpu_custom_call.1} parent=1 // loop_header_branch
      %13 = sbr.rel (%p11) target = $region8
    $region5: #{tpu_custom_call.1} parent=1 // loop_body
      %s15 = ssub.s32 %s10, 1
      %s16 = ssub.s32 %s10, 2
      %s23 = sadd.s32 1, %s18
      %p24 = scmp.ge.s32.totalorder %s23, 2
      %s25 = scalar_select %p24, 0, %s23
      %s26 = sadd.s32 1, %s17
      %s27 = scalar_select %p24, %s26, %s17
      %p28 = scmp.ge.s32.totalorder %s27, 3
      %s29 = scalar_select %p28, 0, %s27
      %s30 = ssub.s32 %s17, %s29
      %s31 = ssub.s32 %s18, %s25
      %s32 = sor.u32 %s30, %s31
      %p33 = scmp.eq.s32.totalorder %s32, 0
      %s35 = sadd.s32 %s34, 1
      %s36 = scalar_select %p33, %s34, %s35
      %p39 = pneg %p33
      %p40 = scmp.eq.s32.totalorder %s10, 5
      %p41 = por %p39, %p40
      %p42 = scmp.ne.s32.totalorder %s34, %s37
      %p43 = scmp.eq.s32.totalorder %s10, 0
      %p44 = por %p42, %p43
      %p45 = scmp.ne.s32.totalorder %s34, %s37
      %p46 = scmp.eq.s32.totalorder %s15, 5
      %p47 = por %p45, %p46
      %p48 = scmp.ne.s32.totalorder %s37, %s38
      %p49 = scmp.eq.s32.totalorder %s15, 0
      %p50 = por %p48, %p49
      %p51 = scmp.ne.s32.totalorder %s37, %s38
      %p52 = scmp.eq.s32.totalorder %s16, 5
      %p53 = por %p51, %p52
      %p55 = scmp.ne.s32.totalorder %s38, %s54
      %p56 = scmp.eq.s32.totalorder %s16, 0
      %p57 = por %p55, %p56
      %s58 = ssub.s32 %s17, %s29
      %s59 = ssub.s32 %s18, %s25
      %s60 = sor.u32 %s58, %s59
      %p61 = scmp.eq.s32.totalorder %s60, 0
      %s63 = sadd.s32 %s62, 1
      %s64 = scalar_select %p61, %s62, %s63
      %p67 = pneg %p61
      %p68 = scmp.eq.s32.totalorder %s10, 5
      %p69 = por %p67, %p68
      %p70 = scmp.ne.s32.totalorder %s62, %s65
      %p71 = scmp.eq.s32.totalorder %s10, 0
      %p72 = por %p70, %p71
      %p73 = scmp.ne.s32.totalorder %s62, %s65
      %p74 = scmp.eq.s32.totalorder %s15, 5
      %p75 = por %p73, %p74
      %p76 = scmp.ne.s32.totalorder %s65, %s66
      %p77 = scmp.eq.s32.totalorder %s15, 0
      %p78 = por %p76, %p77
      %p79 = scmp.ne.s32.totalorder %s65, %s66
      %p80 = scmp.eq.s32.totalorder %s16, 5
      %p81 = por %p79, %p80
      %p83 = scmp.ne.s32.totalorder %s66, %s82
      %p84 = scmp.eq.s32.totalorder %s16, 0
      %p85 = por %p83, %p84
      %p86 = scmp.le.s32.totalorder 1, %s10
      %p87 = scmp.lt.s32.totalorder %s10, 7
      %p88 = pnand %p86, %p87
      %p89 = pneg %p88
      // Predicated region
      $region9: #{tpu_custom_call.1} parent=5 // pred_check
        _
      $region10: #{tpu_custom_call.1} parent=5 // pred_check_branch
        %91 = sbr.rel (%p88) target = $region12
      $region11: #{tpu_custom_call.1} parent=5 // pred_region
        %s92 = ssub.s32 %s10, 1
      $region12: #{tpu_custom_call.1} parent=5 // pred_fallthru
        _
      %p93 = scmp.lt.s32.totalorder %s10, 6
      // Predicated region
      $region13: #{tpu_custom_call.1} parent=5 // pred_check
        %p94 = pneg %p93
      $region14: #{tpu_custom_call.1} parent=5 // pred_check_branch
        %96 = sbr.rel (%p94) target = $region16
      $region15: #{tpu_custom_call.1} parent=5 // pred_region
        // Predicated region
        $region17: #{tpu_custom_call.1} parent=15 // pred_check
          %p97 = pneg %p44
        $region18: #{tpu_custom_call.1} parent=15 // pred_check_branch
          %99 = sbr.rel (%p97) target = $region20
        $region19: #{tpu_custom_call.1} parent=15 // pred_region
          %s100 = smul.u32 6, %s18
          %p101 = scmp.lt.s32.totalorder %s17, 2
          %s102 = scalar_select %p101, %s17, 2
          %p103 = scmp.lt.s32.totalorder %s100, 11
          %s104 = scalar_select %p103, %s100, 11
          %s105 = smul.addr %s102, 12
          %s106 = sadd.s32 %s104, %s105
          %s107 = smul.addr %s106, 8
          %s108 = scalar_lea.vmem %s0, %s107
          %s109 = smul.u32 6, %s18
        $region20: #{tpu_custom_call.1} parent=15 // pred_fallthru
          _
      $region16: #{tpu_custom_call.1} parent=5 // pred_fallthru
        _
      %p110 = scmp.le.s32.totalorder 1, %s10
      %p111 = scmp.lt.s32.totalorder %s10, 7
      %p112 = pnand %p110, %p111
      %p113 = pneg %p112
      // Predicated region
      $region21: #{tpu_custom_call.1} parent=5 // pred_check
        _
      $region22: #{tpu_custom_call.1} parent=5 // pred_check_branch
        %115 = sbr.rel (%p112) target = $region24
      $region23: #{tpu_custom_call.1} parent=5 // pred_region
        %s116 = ssub.s32 %s10, 1
        %s117 = smul.u32 6, %s20
        %p118 = scmp.lt.s32.totalorder %s19, 2
        %s119 = scalar_select %p118, %s19, 2
        %p120 = scmp.lt.s32.totalorder %s117, 11
        %s121 = scalar_select %p120, %s117, 11
        %s122 = smul.addr %s119, 12
        %s123 = sadd.s32 %s121, %s122
        %s124 = smul.addr %s123, 8
        %s125 = scalar_lea.vmem %s0, %s124
        %p126 = pneg %p50
        %p127 = pneg %p47
        %p128 = pneg %p78
        %p129 = pneg %p75
        %s130 = sand.u32 %s65, 1
        %s131 = scalar_lea.sflag [#allocation3], %s130
        %s132 = sand.u32 %s65, 1
        %s133 = smul.addr %s132, 48
        %s134 = scalar_lea.vmem [#allocation2], %s133
        %s135 = smul.u32 6, %s20
        %p136 = scmp.lt.s32.totalorder %s19, 2
        %s137 = scalar_select %p136, %s19, 2
        %p138 = scmp.lt.s32.totalorder %s135, 11
        %s139 = scalar_select %p138, %s135, 11
        %s140 = smul.addr %s137, 12
        %s141 = sadd.s32 %s139, %s140
        %s142 = smul.addr %s141, 8
        %s143 = scalar_lea.vmem %s0, %s142
        %s144 = smul.u32 6, %s20
        %s145 = smul.u32 6, %s20
        %vm146 = vcmask 130048
        %147 = vst.msk [vmem:[%s134] sm:$0xff] %vm146, 0.0
        %148 = vst.msk [vmem:[%s134 + $0x8] sm:$0xff] %vm146, 0.0
        %149 = vst.msk [vmem:[%s134 + $0x10] sm:$0xff] %vm146, 0.0
        %150 = vst.msk [vmem:[%s134 + $0x18] sm:$0xff] %vm146, 0.0
        %151 = vst.msk [vmem:[%s134 + $0x20] sm:$0xff] %vm146, 0.0
        %152 = vst.msk [vmem:[%s134 + $0x28] sm:$0xff] %vm146, 0.0
        %vm153 = vcmask 786048
        %154 = vst.msk [vmem:[%s134] sm:$0xff] %vm153, 0.0
        %155 = vst.msk [vmem:[%s134 + $0x8] sm:$0xff] %vm153, 0.0
        %156 = vst.msk [vmem:[%s134 + $0x10] sm:$0xff] %vm153, 0.0
        %157 = vst.msk [vmem:[%s134 + $0x18] sm:$0xff] %vm153, 0.0
        %158 = vst.msk [vmem:[%s134 + $0x20] sm:$0xff] %vm153, 0.0
        %159 = vst.msk [vmem:[%s134 + $0x28] sm:$0xff] %vm153, 0.0
        %v160 = vld [vmem:[%s143] sm:$0xff]
        %v161 = vld [vmem:[%s143 + $0x8] sm:$0xff]
        %v162 = vld [vmem:[%s143 + $0x10] sm:$0xff]
        %v163 = vld [vmem:[%s143 + $0x18] sm:$0xff]
        %v164 = vld [vmem:[%s143 + $0x20] sm:$0xff]
        %v165 = vld [vmem:[%s143 + $0x28] sm:$0xff]
        %172 = vrot.lane.b32.xlu0 %v160, 16
        %v173 = vpop.permute.xlu0 %172
        %174 = vrot.lane.b32.xlu0 %v161, 16
        %v175 = vpop.permute.xlu0 %174
        %176 = vrot.lane.b32.xlu0 %v162, 16
        %v177 = vpop.permute.xlu0 %176
        %178 = vrot.lane.b32.xlu0 %v163, 16
        %v179 = vpop.permute.xlu0 %178
        %180 = vrot.lane.b32.xlu0 %v164, 16
        %v181 = vpop.permute.xlu0 %180
        %182 = vrot.lane.b32.xlu0 %v165, 16
        %v183 = vpop.permute.xlu0 %182
        %vm190 = vcmask 654464
        %191 = vst.msk [vmem:[%s134] sm:$0xff] %vm190, %v173
        %192 = vst.msk [vmem:[%s134 + $0x8] sm:$0xff] %vm190, %v175
        %193 = vst.msk [vmem:[%s134 + $0x10] sm:$0xff] %vm190, %v177
        %194 = vst.msk [vmem:[%s134 + $0x18] sm:$0xff] %vm190, %v179
        %195 = vst.msk [vmem:[%s134 + $0x20] sm:$0xff] %vm190, %v181
        %196 = vst.msk [vmem:[%s134 + $0x28] sm:$0xff] %vm190, %v183
        %s197 = sand.u32 %s65, 1
        %s198 = scalar_lea.sflag [#allocation3], %s197
        %s199 = sand.u32 %s65, 1
        %s200 = smul.addr %s199, 48
        %s201 = scalar_lea.vmem [#allocation2], %s200
        // Predicated region
        $region25: #{tpu_custom_call.1} parent=23 // pred_check
          %p202 = pneg %p75
        $region26: #{tpu_custom_call.1} parent=23 // pred_check_branch
          %204 = sbr.rel (%p202) target = $region28
        $region27: #{tpu_custom_call.1} parent=23 // pred_region
          %s205 = smul.u32 6, %s20
          %s207 = ssub.s32 768, 768
          %208 = vsyncadd %s198, %s207
          %s209 = smul.addr %s19, 12
          %s210 = sadd.s32 %s205, %s209
          %s211 = smul.addr %s210, 128
          %s212 = scalar_lea.hbm %s1, %s211
          %s213 = sshll.u32 %s201, 4
          %s214 = int_to_ptr.vmem [resolvable:$true] %s213
          %219 = dma.vmem_to_hbm [thread:$0]  %s214, 768, %s212, %s198, 128, 128, 8
        $region28: #{tpu_custom_call.1} parent=23 // pred_fallthru
          _
      $region24: #{tpu_custom_call.1} parent=5 // pred_fallthru
        _
      %p220 = scmp.le.s32.totalorder 2, %s10
      // Predicated region
      $region29: #{tpu_custom_call.1} parent=5 // pred_check
        %p221 = pneg %p220
      $region30: #{tpu_custom_call.1} parent=5 // pred_check_branch
        %223 = sbr.rel (%p221) target = $region32
      $region31: #{tpu_custom_call.1} parent=5 // pred_region
        %s224 = ssub.s32 %s10, 2
        // Predicated region
        $region33: #{tpu_custom_call.1} parent=31 // pred_check
          %p225 = pneg %p81
        $region34: #{tpu_custom_call.1} parent=31 // pred_check_branch
          %227 = sbr.rel (%p225) target = $region36
        $region35: #{tpu_custom_call.1} parent=31 // pred_region
          %s228 = sand.u32 %s66, 1
          %s229 = scalar_lea.sflag [#allocation3], %s228
          %s230 = sand.u32 %s66, 1
          %s231 = smul.addr %s230, 48
          %s232 = scalar_lea.vmem [#allocation2], %s231
          %233 = dma.done %s229, 768
        $region36: #{tpu_custom_call.1} parent=31 // pred_fallthru
          _
      $region32: #{tpu_custom_call.1} parent=5 // pred_fallthru
        _
    $region6: #{tpu_custom_call.1} parent=1 // loop_footer
      %s14 = sadd.s32 1, %s10
    $region7: #{tpu_custom_call.1} parent=1 // loop_footer_branch
      %9 = sbr.rel target = $region3
    $region8: #{tpu_custom_call.1} parent=1 // loop_exit
      _
    %234 = vsyncpa [#allocation3], 1
    %s235 = scalar_lea.sflag [#allocation3], 1
    %236 = vsyncpa %s235, 1

</llo_original>
